<compile_context>
chip_gen: v7x
topology: tpu7x:2x2x1
jax: 0.10.0
libtpu: 0.0.40
codegen_flags: <defaults>
</compile_context>

<pallas_src>
import functools

import jax
import jax.numpy as jnp
from jax import lax
from jax.experimental import pallas as pl
from jax.experimental.pallas import tpu as pltpu

_MIB = 1024 * 1024


def _round_up(x: int, m: int) -> int:
    return ((x + m - 1) // m) * m


def _physical_vmem_bytes() -> int:
    """Per-TensorCore VMEM capacity (64 MiB on v7x, 128 MiB on v5e/v6e)."""
    try:
        return int(pltpu.get_tpu_info().vmem_capacity_bytes)
    except Exception:
        return 64 * _MIB  # conservative default (v7x per-TC)


def _epilogue(y, use_sigmoid: bool, use_softmax: bool, out_valid: int):
    if use_sigmoid:
        return jax.nn.sigmoid(y)
    if use_softmax:
        if out_valid < y.shape[-1]:
            # Mask zero-padded logit columns only when padding actually exists.
            col = lax.broadcasted_iota(jnp.int32, y.shape, 1)
            y = jnp.where(col < out_valid, y, -1e30)
        return jax.nn.log_softmax(y, axis=-1)
    return y


def _resident_kernel(x_ref, w1_ref, b1_ref, w2_ref, b2_ref, o_ref, *,
                     use_sigmoid, use_softmax, out_valid, compute_dtype):
    # fc1: MXU matmul with f32 accumulation; bias + ReLU in f32.
    xc = x_ref[...].astype(compute_dtype)
    h = jnp.dot(xc, w1_ref[...], preferred_element_type=jnp.float32)
    h = jnp.maximum(h + b1_ref[...], 0.0)
    # fc2 + epilogue.
    y = jnp.dot(h.astype(w2_ref.dtype), w2_ref[...],
                preferred_element_type=jnp.float32)
    y = y + b2_ref[...]
    o_ref[...] = _epilogue(y, use_sigmoid, use_softmax, out_valid).astype(o_ref.dtype)


def _hid_tiled_kernel(x_ref, w1_ref, b1_ref, w2_ref, b2_ref, o_ref, acc_ref, *,
                      use_sigmoid, use_softmax, out_valid, compute_dtype):
    # Grid = (batch tile, hid chunk); hid axis is innermost / "arbitrary".
    j = pl.program_id(1)

    @pl.when(j == 0)
    def _():
        acc_ref[...] = jnp.zeros_like(acc_ref)

    xc = x_ref[...].astype(compute_dtype)
    h = jnp.dot(xc, w1_ref[...], preferred_element_type=jnp.float32)
    h = jnp.maximum(h + b1_ref[...], 0.0)
    acc_ref[...] += jnp.dot(h.astype(w2_ref.dtype), w2_ref[...],
                            preferred_element_type=jnp.float32)

    @pl.when(j == pl.num_programs(1) - 1)
    def _():
        y = acc_ref[...] + b2_ref[...]
        o_ref[...] = _epilogue(y, use_sigmoid, use_softmax, out_valid).astype(o_ref.dtype)


def prepare_mlp_params(w1, b1, w2, b2, compute_dtype=jnp.bfloat16):
    """One-time weight prep (hoist this out of the per-call path): cast to the
    MXU compute dtype and zero-pad hid/out feature dims up to multiples of 128
    (skipped when already aligned).  Zero padding is inert through
    fc1 -> ReLU -> fc2."""
    in_f, hid = w1.shape
    hid2, out_f = w2.shape
    assert hid2 == hid and b1.shape[-1] == hid and b2.shape[-1] == out_f
    hid_p = _round_up(hid, 128)
    out_p = _round_up(out_f, 128)

    def _pad2(a, rows, cols, dtype):
        a = a.astype(dtype)
        if a.shape == (rows, cols):
            return a  # already aligned: plain cast, no extra HBM pass
        return jnp.zeros((rows, cols), dtype).at[:a.shape[0], :a.shape[1]].set(a)

    return dict(
        w1=_pad2(w1, in_f, hid_p, compute_dtype),
        b1=_pad2(b1.reshape(1, hid), 1, hid_p, jnp.float32),
        w2=_pad2(w2, hid_p, out_p, compute_dtype),
        b2=_pad2(b2.reshape(1, out_f), 1, out_p, jnp.float32),
        in_features=in_f, hid_features=hid, out_features=out_f,
        compute_dtype=compute_dtype,
    )


def _choose_tile_b(B, max_tile_b, fits):
    tile_b = max(8, min(_round_up(max_tile_b, 8), _round_up(B, 8)))
    # Shrink until the VMEM working set fits the budget.
    while tile_b > 8 and not fits(tile_b):
        tile_b = max(8, _round_up(tile_b // 2, 8))
    if not fits(tile_b):
        return None
    # Limit padded batch-tail waste to ~15% of the padded batch.
    while tile_b > 8:
        b_p = _round_up(B, tile_b)
        if (b_p - B) * 100 <= 15 * b_p:
            break
        tile_b = max(8, _round_up(tile_b // 2, 8))
    # Keep the (parallel) batch grid >= 2 steps when possible so both
    # TensorCores of a dual-core chip (v7x megacore) get work.
    if B > 8:
        tile_b = min(tile_b, max(8, _round_up((B + 1) // 2, 8)))
    return tile_b


def mlp_pallas_prepared(x, params, *, sigmoid=True, softmax=False,
                        max_tile_b=512, force_hid_tiling=False,
                        force_tile_h=None):
    """x: (B, in_features); params from prepare_mlp_params()."""
    w1p, b1p, w2p, b2p = params["w1"], params["b1"], params["w2"], params["b2"]
    in_f = params["in_features"]
    out_f = params["out_features"]
    cdt = params["compute_dtype"]
    hid_p = w1p.shape[1]
    out_p = w2p.shape[1]

    B = x.shape[0]
    assert x.shape == (B, in_f), (x.shape, in_f)
    out_dtype = x.dtype
    xbytes = jnp.dtype(x.dtype).itemsize
    cbytes = jnp.dtype(cdt).itemsize
    obytes = jnp.dtype(out_dtype).itemsize

    # Per-generation VMEM budget with headroom for Mosaic internals.
    vmem_limit = max(32 * _MIB, min(_physical_vmem_bytes() - 8 * _MIB, 120 * _MIB))
    budget = vmem_limit - 4 * _MIB

    wbytes = sum(int(a.size) * a.dtype.itemsize for a in (w1p, b1p, w2p, b2p))

    def resident_fits(tb):
        per_tile = (2 * tb * in_f * xbytes      # double-buffered x tile
                    + 2 * tb * out_p * obytes   # double-buffered out tile
                    + tb * hid_p * 4            # f32 hidden activation
                    + tb * hid_p * cbytes       # compute-dtype copy of hidden
                    + tb * out_p * 4)           # f32 logits / epilogue
        return wbytes + per_tile <= budget      # weights single-buffered

    use_hid_tiling = bool(force_hid_tiling)
    tile_b = None
    if not use_hid_tiling:
        tile_b = _choose_tile_b(B, max_tile_b, resident_fits)
        use_hid_tiling = tile_b is None         # weights can't stay resident

    tile_h = None
    if use_hid_tiling:
        # Stream hid-chunks of w1/b1/w2; keep x, b2 and the accumulator
        # resident.  tile_h must divide hid_p (a multiple of 128).
        if force_tile_h is not None:
            tile_h = int(force_tile_h)
            assert tile_h % 128 == 0 and hid_p % tile_h == 0
        else:
            tile_h = 128
            for cand in (2048, 1024, 512, 256):
                if hid_p % cand == 0:
                    tile_h = cand
                    break

        def hid_fits(tb):
            resident = (out_p * 4                    # b2 (single-buffered)
                        + 2 * tb * in_f * xbytes     # x tile
                        + 2 * tb * out_p * obytes    # out tile
                        + tb * out_p * 4)            # f32 accumulator scratch
            streamed = 2 * (in_f * tile_h * cbytes   # w1 hid-chunk (dbl buf)
                            + tile_h * 4             # b1 hid-chunk
                            + tile_h * out_p * cbytes)  # w2 hid-chunk
            work = tb * tile_h * 4 + tb * tile_h * cbytes + tb * out_p * 4
            return resident + streamed + work <= budget

        while force_tile_h is None and tile_h > 128 and not hid_fits(8):
            tile_h //= 2
        tile_b = _choose_tile_b(B, max_tile_b, hid_fits)
        if tile_b is None:
            raise ValueError(
                "mlp_pallas: shapes too large to fit VMEM even with tile_b=8 "
                f"and tile_h={tile_h} (budget={budget} bytes).")

    b_p = _round_up(B, tile_b)
    # Only batch rows are padded (feature dim passed through unpadded; the
    # compute-dtype cast happens inside the kernel -> no extra HBM pass).
    xp = x if b_p == B else jnp.zeros((b_p, in_f), x.dtype).at[:B, :].set(x)

    try:
        cost = pl.CostEstimate(
            flops=2 * b_p * (in_f * hid_p + hid_p * out_p),
            transcendentals=(b_p * out_p) if (sigmoid or softmax) else 0,
            bytes_accessed=int(b_p * in_f * xbytes + wbytes
                               + b_p * out_p * obytes),
        )
    except Exception:
        cost = None

    def _resident_spec(shape, index_map, single_buffer):
        if single_buffer:
            return pl.BlockSpec(shape, index_map, pipeline_mode=pl.Buffered(1))
        return pl.BlockSpec(shape, index_map)

    def run(single_buffer_weights):
        if not use_hid_tiling:
            kernel = functools.partial(
                _resident_kernel, use_sigmoid=sigmoid, use_softmax=softmax,
                out_valid=out_f, compute_dtype=cdt)
            grid = (b_p // tile_b,)
            in_specs = [
                pl.BlockSpec((tile_b, in_f), lambda i: (i, 0)),       # x tile
                _resident_spec((in_f, hid_p), lambda i: (0, 0),
                               single_buffer_weights),                # w1
                _resident_spec((1, hid_p), lambda i: (0, 0),
                               single_buffer_weights),                # b1
                _resident_spec((hid_p, out_p), lambda i: (0, 0),
                               single_buffer_weights),                # w2
                _resident_spec((1, out_p), lambda i: (0, 0),
                               single_buffer_weights),                # b2
            ]
            out_specs = pl.BlockSpec((tile_b, out_p), lambda i: (i, 0))
            scratch = []
            dims = ("parallel",)
        else:
            kernel = functools.partial(
                _hid_tiled_kernel, use_sigmoid=sigmoid, use_softmax=softmax,
                out_valid=out_f, compute_dtype=cdt)
            grid = (b_p // tile_b, hid_p // tile_h)
            in_specs = [
                pl.BlockSpec((tile_b, in_f), lambda i, j: (i, 0)),    # x tile
                pl.BlockSpec((in_f, tile_h), lambda i, j: (0, j)),    # w1 chunk
                pl.BlockSpec((1, tile_h), lambda i, j: (0, j)),       # b1 chunk
                pl.BlockSpec((tile_h, out_p), lambda i, j: (j, 0)),   # w2 chunk
                _resident_spec((1, out_p), lambda i, j: (0, 0),
                               single_buffer_weights),                # b2
            ]
            out_specs = pl.BlockSpec((tile_b, out_p), lambda i, j: (i, 0))
            scratch = [pltpu.VMEM((tile_b, out_p), jnp.float32)]
            dims = ("parallel", "arbitrary")

        return pl.pallas_call(
            kernel,
            out_shape=jax.ShapeDtypeStruct((b_p, out_p), out_dtype),
            grid=grid,
            in_specs=in_specs,
            out_specs=out_specs,
            scratch_shapes=scratch,
            compiler_params=pltpu.CompilerParams(
                dimension_semantics=dims,
                vmem_limit_bytes=vmem_limit),
            cost_estimate=cost,
        )(xp, w1p, b1p, w2p, b2p)

    try:
        out = run(True)
    except Exception:
        # This jax build may not accept pipeline_mode=pl.Buffered(1);
        # retry with default double-buffered resident weights.
        out = run(False)

    if b_p != B or out_p != out_f:
        out = out[:B, :out_f]   # drop batch and lane padding
    return out


def mlp_pallas(x, w1, b1, w2, b2, *, sigmoid=True, softmax=False,
               compute_dtype=jnp.bfloat16, **kwargs):
    """Convenience wrapper (for best performance, call prepare_mlp_params once
    at model setup and reuse the prepared params across calls)."""
    params = prepare_mlp_params(w1, b1, w2, b2, compute_dtype)
    return mlp_pallas_prepared(x, params, sigmoid=sigmoid, softmax=softmax,
                               **kwargs)


def mlp_reference(x, w1, b1, w2, b2, *, sigmoid=True, softmax=False):
    h = jnp.maximum(x @ w1 + b1, 0.0)
    y = h @ w2 + b2
    if sigmoid:
        return jax.nn.sigmoid(y)
    if softmax:
        return jax.nn.log_softmax(y, axis=-1)
    return y


if __name__ == "__main__":
    key = jax.random.PRNGKey(0)
    (kx, kw1, kb1, kw2, kb2,
     kx2, kw1b, kb1b, kw2b, kb2b) = jax.random.split(key, 10)

    # Small shapes consistent with the module: batch=8, in=32, hid=64, out=16.
    B, in_f, hid_f, out_f = 8, 32, 64, 16
    x = jax.random.normal(kx, (B, in_f), dtype=jnp.float32)
    # torch Linear weights are (out, in); we use the transposed (in, out) layout.
    w1 = jax.random.normal(kw1, (in_f, hid_f), dtype=jnp.float32) * 0.1
    b1 = jax.random.normal(kb1, (hid_f,), dtype=jnp.float32) * 0.1
    w2 = jax.random.normal(kw2, (hid_f, out_f), dtype=jnp.float32) * 0.1
    b2 = jax.random.normal(kb2, (out_f,), dtype=jnp.float32) * 0.1

    ref_sig = mlp_reference(x, w1, b1, w2, b2, sigmoid=True, softmax=False)

    # Production path: one-time weight prep (bf16), then the fused kernel.
    params_bf16 = prepare_mlp_params(w1, b1, w2, b2, jnp.bfloat16)
    out_bf16 = mlp_pallas_prepared(x, params_bf16, sigmoid=True)
    jax.block_until_ready(out_bf16)
    assert out_bf16.shape == (B, out_f)
    assert jnp.allclose(out_bf16, ref_sig, atol=2e-2, rtol=2e-2)

    # Tight correctness check with f32 compute.
    params_f32 = prepare_mlp_params(w1, b1, w2, b2, jnp.float32)
    out_f32 = mlp_pallas_prepared(x, params_f32, sigmoid=True)
    jax.block_until_ready(out_f32)
    assert jnp.allclose(out_f32, ref_sig, atol=1e-5, rtol=1e-5)

    # log_softmax epilogue (padded logit columns masked inside the kernel).
    ref_ls = mlp_reference(x, w1, b1, w2, b2, sigmoid=False, softmax=True)
    out_ls = mlp_pallas_prepared(x, params_f32, sigmoid=False, softmax=True)
    jax.block_until_ready(out_ls)
    assert jnp.allclose(out_ls, ref_ls, atol=1e-5, rtol=1e-5)

    # Exercise the hid-tiled fallback path (streams w1/b1/w2 hid-chunks and
    # accumulates fc2 in a VMEM scratch across the "arbitrary" grid axis).
    B2, in2, hid2, out2 = 16, 32, 256, 16
    x2 = jax.random.normal(kx2, (B2, in2), dtype=jnp.float32)
    w1b = jax.random.normal(kw1b, (in2, hid2), dtype=jnp.float32) * 0.1
    b1b = jax.random.normal(kb1b, (hid2,), dtype=jnp.float32) * 0.1
    w2b = jax.random.normal(kw2b, (hid2, out2), dtype=jnp.float32) * 0.1
    b2b = jax.random.normal(kb2b, (out2,), dtype=jnp.float32) * 0.1
    ref2 = mlp_reference(x2, w1b, b1b, w2b, b2b, sigmoid=True, softmax=False)
    params2 = prepare_mlp_params(w1b, b1b, w2b, b2b, jnp.float32)
    out2_tiled = mlp_pallas_prepared(x2, params2, sigmoid=True,
                                     force_hid_tiling=True, force_tile_h=128)
    jax.block_until_ready(out2_tiled)
    assert out2_tiled.shape == (B2, out2)
    assert jnp.allclose(out2_tiled, ref2, atol=1e-4, rtol=1e-4)

    print("KERNEL_OK")
</pallas_src>

<mosaic_0001>
module attributes {stable_mosaic.version = 11 : i64} {
  func.func @_resident_kernel(%arg0: i32, %arg1: memref<8x32xf32, #tpu.memory_space<vmem>>, %arg2: memref<32x128xbf16, #tpu.memory_space<vmem>>, %arg3: memref<1x128xf32, #tpu.memory_space<vmem>>, %arg4: memref<128x128xbf16, #tpu.memory_space<vmem>>, %arg5: memref<1x128xf32, #tpu.memory_space<vmem>>, %arg6: memref<8x128xf32, #tpu.memory_space<vmem>>) attributes {dimension_semantics = [#tpu.dimension_semantics<parallel>], iteration_bounds = array<i64: 1>, scalar_prefetch = 0 : i64, scratch_operands = 0 : i64, tpu.core_type = #tpu.core_type<tc>, window_params = [{transform_indices = @transform_0, window_bounds = array<i64: 8, 32>}, {pipeline_mode = #tpu.pipeline_mode<synchronous>, transform_indices = @transform_1, window_bounds = array<i64: 32, 128>}, {pipeline_mode = #tpu.pipeline_mode<synchronous>, transform_indices = @transform_2, window_bounds = array<i64: 1, 128>}, {pipeline_mode = #tpu.pipeline_mode<synchronous>, transform_indices = @transform_3, window_bounds = array<i64: 128, 128>}, {pipeline_mode = #tpu.pipeline_mode<synchronous>, transform_indices = @transform_4, window_bounds = array<i64: 1, 128>}, {transform_indices = @transform_5, window_bounds = array<i64: 8, 128>}]} {
    %c0 = arith.constant 0 : index
    %c0_0 = arith.constant 0 : index
    %0 = vector.load %arg1[%c0, %c0_0] : memref<8x32xf32, #tpu.memory_space<vmem>>, vector<8x32xf32>
    %1 = arith.truncf %0 : vector<8x32xf32> to vector<8x32xbf16>
    %c0_1 = arith.constant 0 : index
    %c0_2 = arith.constant 0 : index
    %2 = vector.load %arg2[%c0_1, %c0_2] : memref<32x128xbf16, #tpu.memory_space<vmem>>, vector<32x128xbf16>
    %cst = arith.constant dense<0.000000e+00> : vector<8x128xf32>
    %3 = tpu.matmul %1, %2, %cst {dimension_numbers = #tpu.dot_dimension_numbers<[1], [0], [0], [1], [0, 0, 1, 1], [], []>} : vector<8x32xbf16>, vector<32x128xbf16>, vector<8x128xf32> -> vector<8x128xf32>
    %c0_3 = arith.constant 0 : index
    %c0_4 = arith.constant 0 : index
    %4 = vector.load %arg3[%c0_3, %c0_4] : memref<1x128xf32, #tpu.memory_space<vmem>>, vector<1x128xf32>
    %5 = vector.broadcast %4 : vector<1x128xf32> to vector<8x128xf32>
    %6 = arith.addf %3, %5 : vector<8x128xf32>
    %cst_5 = arith.constant 0.000000e+00 : f32
    %7 = vector.broadcast %cst_5 : f32 to vector<8x128xf32>
    %8 = arith.maximumf %6, %7 : vector<8x128xf32>
    %9 = arith.truncf %8 : vector<8x128xf32> to vector<8x128xbf16>
    %c0_6 = arith.constant 0 : index
    %c0_7 = arith.constant 0 : index
    %10 = vector.load %arg4[%c0_6, %c0_7] : memref<128x128xbf16, #tpu.memory_space<vmem>>, vector<128x128xbf16>
    %cst_8 = arith.constant dense<0.000000e+00> : vector<8x128xf32>
    %11 = tpu.matmul %9, %10, %cst_8 {dimension_numbers = #tpu.dot_dimension_numbers<[1], [0], [0], [1], [0, 0, 1, 1], [], []>} : vector<8x128xbf16>, vector<128x128xbf16>, vector<8x128xf32> -> vector<8x128xf32>
    %c0_9 = arith.constant 0 : index
    %c0_10 = arith.constant 0 : index
    %12 = vector.load %arg5[%c0_9, %c0_10] : memref<1x128xf32, #tpu.memory_space<vmem>>, vector<1x128xf32>
    %13 = vector.broadcast %12 : vector<1x128xf32> to vector<8x128xf32>
    %14 = arith.addf %11, %13 : vector<8x128xf32>
    %15 = arith.negf %14 : vector<8x128xf32>
    %16 = math.exp %15 : vector<8x128xf32>
    %cst_11 = arith.constant 1.000000e+00 : f32
    %17 = vector.broadcast %cst_11 : f32 to vector<8x128xf32>
    %18 = arith.addf %17, %16 : vector<8x128xf32>
    %19 = arith.divf %17, %18 : vector<8x128xf32>
    %c0_12 = arith.constant 0 : index
    %c0_13 = arith.constant 0 : index
    %20 = vector.load %arg6[%c0_12, %c0_13] : memref<8x128xf32, #tpu.memory_space<vmem>>, vector<8x128xf32>
    tpu.vector_store %arg6[%c0_12, %c0_13], %19 {strides = array<i32>} : memref<8x128xf32, #tpu.memory_space<vmem>>, vector<8x128xf32>,
    return
  }
  func.func @transform_0(%arg0: i32) -> (i32, i32) {
    %c0_i32 = arith.constant 0 : i32
    %c0_i32_0 = arith.constant 0 : i32
    return %arg0, %c0_i32 : i32, i32
  }
  func.func @transform_1(%arg0: i32) -> (i32, i32) {
    %c0_i32 = arith.constant 0 : i32
    %c0_i32_0 = arith.constant 0 : i32
    %c0_i32_1 = arith.constant 0 : i32
    return %c0_i32, %c0_i32_0 : i32, i32
  }
  func.func @transform_2(%arg0: i32) -> (i32, i32) {
    %c0_i32 = arith.constant 0 : i32
    %c0_i32_0 = arith.constant 0 : i32
    %c0_i32_1 = arith.constant 0 : i32
    return %c0_i32, %c0_i32_0 : i32, i32
  }
  func.func @transform_3(%arg0: i32) -> (i32, i32) {
    %c0_i32 = arith.constant 0 : i32
    %c0_i32_0 = arith.constant 0 : i32
    %c0_i32_1 = arith.constant 0 : i32
    return %c0_i32, %c0_i32_0 : i32, i32
  }
  func.func @transform_4(%arg0: i32) -> (i32, i32) {
    %c0_i32 = arith.constant 0 : i32
    %c0_i32_0 = arith.constant 0 : i32
    %c0_i32_1 = arith.constant 0 : i32
    return %c0_i32, %c0_i32_0 : i32, i32
  }
  func.func @transform_5(%arg0: i32) -> (i32, i32) {
    %c0_i32 = arith.constant 0 : i32
    %c0_i32_0 = arith.constant 0 : i32
    return %arg0, %c0_i32 : i32, i32
  }
}

module attributes {stable_mosaic.version = 11 : i64} {
  func.func @_resident_kernel(%arg0: i32, %arg1: memref<8x32xf32, #tpu.memory_space<vmem>>, %arg2: memref<32x128xbf16, #tpu.memory_space<vmem>>, %arg3: memref<1x128xf32, #tpu.memory_space<vmem>>, %arg4: memref<128x128xbf16, #tpu.memory_space<vmem>>, %arg5: memref<1x128xf32, #tpu.memory_space<vmem>>, %arg6: memref<8x128xf32, #tpu.memory_space<vmem>>) attributes {dimension_semantics = [#tpu.dimension_semantics<parallel>], iteration_bounds = array<i64: 1>, scalar_prefetch = 0 : i64, scratch_operands = 0 : i64, tpu.core_type = #tpu.core_type<tc>, window_params = [{transform_indices = @transform_0, window_bounds = array<i64: 8, 32>}, {pipeline_mode = #tpu.pipeline_mode<synchronous>, transform_indices = @transform_1, window_bounds = array<i64: 32, 128>}, {pipeline_mode = #tpu.pipeline_mode<synchronous>, transform_indices = @transform_2, window_bounds = array<i64: 1, 128>}, {pipeline_mode = #tpu.pipeline_mode<synchronous>, transform_indices = @transform_3, window_bounds = array<i64: 128, 128>}, {pipeline_mode = #tpu.pipeline_mode<synchronous>, transform_indices = @transform_4, window_bounds = array<i64: 1, 128>}, {transform_indices = @transform_5, window_bounds = array<i64: 8, 128>}]} {
    %c0 = arith.constant 0 : index
    %c0_0 = arith.constant 0 : index
    %0 = vector.load %arg1[%c0, %c0_0] : memref<8x32xf32, #tpu.memory_space<vmem>>, vector<8x32xf32>
    %1 = arith.truncf %0 : vector<8x32xf32> to vector<8x32xbf16>
    %c0_1 = arith.constant 0 : index
    %c0_2 = arith.constant 0 : index
    %2 = vector.load %arg2[%c0_1, %c0_2] : memref<32x128xbf16, #tpu.memory_space<vmem>>, vector<32x128xbf16>
    %cst = arith.constant dense<0.000000e+00> : vector<8x128xf32>
    %3 = tpu.matmul %1, %2, %cst {dimension_numbers = #tpu.dot_dimension_numbers<[1], [0], [0], [1], [0, 0, 1, 1], [], []>} : vector<8x32xbf16>, vector<32x128xbf16>, vector<8x128xf32> -> vector<8x128xf32>
    %c0_3 = arith.constant 0 : index
    %c0_4 = arith.constant 0 : index
    %4 = vector.load %arg3[%c0_3, %c0_4] : memref<1x128xf32, #tpu.memory_space<vmem>>, vector<1x128xf32>
    %5 = vector.broadcast %4 : vector<1x128xf32> to vector<8x128xf32>
    %6 = arith.addf %3, %5 : vector<8x128xf32>
    %cst_5 = arith.constant 0.000000e+00 : f32
    %7 = vector.broadcast %cst_5 : f32 to vector<8x128xf32>
    %8 = arith.maximumf %6, %7 : vector<8x128xf32>
    %9 = arith.truncf %8 : vector<8x128xf32> to vector<8x128xbf16>
    %c0_6 = arith.constant 0 : index
    %c0_7 = arith.constant 0 : index
    %10 = vector.load %arg4[%c0_6, %c0_7] : memref<128x128xbf16, #tpu.memory_space<vmem>>, vector<128x128xbf16>
    %cst_8 = arith.constant dense<0.000000e+00> : vector<8x128xf32>
    %11 = tpu.matmul %9, %10, %cst_8 {dimension_numbers = #tpu.dot_dimension_numbers<[1], [0], [0], [1], [0, 0, 1, 1], [], []>} : vector<8x128xbf16>, vector<128x128xbf16>, vector<8x128xf32> -> vector<8x128xf32>
    %c0_9 = arith.constant 0 : index
    %c0_10 = arith.constant 0 : index
    %12 = vector.load %arg5[%c0_9, %c0_10] : memref<1x128xf32, #tpu.memory_space<vmem>>, vector<1x128xf32>
    %13 = vector.broadcast %12 : vector<1x128xf32> to vector<8x128xf32>
    %14 = arith.addf %11, %13 : vector<8x128xf32>
    %15 = arith.negf %14 : vector<8x128xf32>
    %16 = math.exp %15 : vector<8x128xf32>
    %cst_11 = arith.constant 1.000000e+00 : f32
    %17 = vector.broadcast %cst_11 : f32 to vector<8x128xf32>
    %18 = arith.addf %17, %16 : vector<8x128xf32>
    %19 = arith.divf %17, %18 : vector<8x128xf32>
    %c0_12 = arith.constant 0 : index
    %c0_13 = arith.constant 0 : index
    %20 = vector.load %arg6[%c0_12, %c0_13] : memref<8x128xf32, #tpu.memory_space<vmem>>, vector<8x128xf32>
    tpu.vector_store %arg6[%c0_12, %c0_13], %19 {strides = array<i32>} : memref<8x128xf32, #tpu.memory_space<vmem>>, vector<8x128xf32>,
    return
  }
  func.func @transform_0(%arg0: i32) -> (i32, i32) {
    %c0_i32 = arith.constant 0 : i32
    %c0_i32_0 = arith.constant 0 : i32
    return %arg0, %c0_i32 : i32, i32
  }
  func.func @transform_1(%arg0: i32) -> (i32, i32) {
    %c0_i32 = arith.constant 0 : i32
    %c0_i32_0 = arith.constant 0 : i32
    %c0_i32_1 = arith.constant 0 : i32
    return %c0_i32, %c0_i32_0 : i32, i32
  }
  func.func @transform_2(%arg0: i32) -> (i32, i32) {
    %c0_i32 = arith.constant 0 : i32
    %c0_i32_0 = arith.constant 0 : i32
    %c0_i32_1 = arith.constant 0 : i32
    return %c0_i32, %c0_i32_0 : i32, i32
  }
  func.func @transform_3(%arg0: i32) -> (i32, i32) {
    %c0_i32 = arith.constant 0 : i32
    %c0_i32_0 = arith.constant 0 : i32
    %c0_i32_1 = arith.constant 0 : i32
    return %c0_i32, %c0_i32_0 : i32, i32
  }
  func.func @transform_4(%arg0: i32) -> (i32, i32) {
    %c0_i32 = arith.constant 0 : i32
    %c0_i32_0 = arith.constant 0 : i32
    %c0_i32_1 = arith.constant 0 : i32
    return %c0_i32, %c0_i32_0 : i32, i32
  }
  func.func @transform_5(%arg0: i32) -> (i32, i32) {
    %c0_i32 = arith.constant 0 : i32
    %c0_i32_0 = arith.constant 0 : i32
    return %arg0, %c0_i32 : i32, i32
  }
}

</mosaic_0001>

<llo_original>
// kernel: tpu_custom_call.1
$region0: #{tpu_custom_call.1}
  #allocation0 [shape = 'u32[]', space=smem, size = 0x4, offset = 0x4, fixed_abs, tag = 'smem constant byte address 0x4 - core index']
  #allocation1 [shape = 'u32[144,128]{1,0:T(1,128)}', space=vmem, size = 0x12000, scoped, tag = 'internal scratch']
  %s0 = inlined_call_operand.hbm [shape: f32[8,32], index: 0, kind: input, shape index: {}]
  %s1 = inlined_call_operand.hbm [shape: bf16[32,128], index: 1, kind: input, shape index: {}]
  %s2 = inlined_call_operand.vmem [shape: f32[1,128], index: 2, kind: input, shape index: {}]
  %s3 = inlined_call_operand.hbm [shape: bf16[128,128], index: 3, kind: input, shape index: {}]
  %s4 = inlined_call_operand.vmem [shape: f32[1,128], index: 4, kind: input, shape index: {}]
  %s5 = inlined_call_operand.hbm [shape: f32[8,128], index: 5, kind: output, shape index: {}]
  %s6 = sld [smem:[#allocation0]]
  $region42: #{tpu_custom_call.1} parent=0
    _
  %s8 = ssub.s32 1, %s6
  %s9 = scalar_select 0, %s8, %s6
  $region1: #{tpu_custom_call.1} parent=0
    #allocation2 [shape = 'u8[4096]{0}', space=vmem, size = 0x1000, scoped, tag = 'input window, operand 0, single buffered']
    #allocation3 [shape = 's32[1]{0}', space=sflag, size = 0x4, scoped, tag = 'scoped memory for tpu_custom_call.1']
    #allocation4 [shape = 's32[1]{0}', space=sflag, size = 0x4, scoped, tag = 'scoped memory for tpu_custom_call.1']
    #allocation5 [shape = 'u8[8192]{0}', space=vmem, size = 0x2000, scoped, tag = 'input window, operand 1, single buffered']
    #allocation6 [shape = 's32[1]{0}', space=sflag, size = 0x4, scoped, tag = 'scoped memory for tpu_custom_call.1']
    #allocation7 [shape = 'u8[32768]{0}', space=vmem, size = 0x8000, scoped, tag = 'input window, operand 3, single buffered']
    #allocation8 [shape = 'u8[4096]{0}', space=vmem, size = 0x1000, scoped, tag = 'output window, operand 0, single buffered']
    %10 = vsyncpa [#allocation3], 0
    %11 = vsyncpa [#allocation6], 0
    %12 = vsyncpa [#allocation4], 0
    // Predicated region
    $region2: #{tpu_custom_call.1} parent=1 // pred_check
      _
    $region3: #{tpu_custom_call.1} parent=1 // pred_check_branch
      %14 = sbr.rel (0) target = $region5
    $region4: #{tpu_custom_call.1} parent=1 // pred_region
      %s16 = ssub.s32 128, 128
      %17 = vsyncadd [#allocation3], %s16
      %s19 = sshll.u32 [#allocation2], 4
      %s20 = int_to_ptr.vmem [resolvable:$true] %s19
      %22 = dma.hbm_to_vmem [thread:$0]  %s0, 128, %s20, [#allocation3]
    $region5: #{tpu_custom_call.1} parent=1 // pred_fallthru
      _
    // Predicated region
    $region6: #{tpu_custom_call.1} parent=1 // pred_check
      _
    $region7: #{tpu_custom_call.1} parent=1 // pred_check_branch
      %24 = sbr.rel (0) target = $region9
    $region8: #{tpu_custom_call.1} parent=1 // pred_region
      %s26 = ssub.s32 256, 256
      %27 = vsyncadd [#allocation6], %s26
      %s28 = sshll.u32 [#allocation5], 4
      %s29 = int_to_ptr.vmem [resolvable:$true] %s28
      %34 = dma.hbm_to_vmem [thread:$0]  %s1, 256, %s29, [#allocation6], 64, 64, 4
    $region9: #{tpu_custom_call.1} parent=1 // pred_fallthru
      _
    // Predicated region
    $region10: #{tpu_custom_call.1} parent=1 // pred_check
      _
    $region11: #{tpu_custom_call.1} parent=1 // pred_check_branch
      %36 = sbr.rel (0) target = $region13
    $region12: #{tpu_custom_call.1} parent=1 // pred_region
      _
    $region13: #{tpu_custom_call.1} parent=1 // pred_fallthru
      _
    // Predicated region
    $region14: #{tpu_custom_call.1} parent=1 // pred_check
      _
    $region15: #{tpu_custom_call.1} parent=1 // pred_check_branch
      %38 = sbr.rel (0) target = $region17
    $region16: #{tpu_custom_call.1} parent=1 // pred_region
      %s40 = ssub.s32 1024, 1024
      %41 = vsyncadd [#allocation6], %s40
      %s42 = sshll.u32 [#allocation7], 4
      %s43 = int_to_ptr.vmem [resolvable:$true] %s42
      %48 = dma.hbm_to_vmem [thread:$0]  %s3, 1024, %s43, [#allocation6], 64, 64, 4
    $region17: #{tpu_custom_call.1} parent=1 // pred_fallthru
      _
    // Predicated region
    $region18: #{tpu_custom_call.1} parent=1 // pred_check
      _
    $region19: #{tpu_custom_call.1} parent=1 // pred_check_branch
      %50 = sbr.rel (0) target = $region21
    $region20: #{tpu_custom_call.1} parent=1 // pred_region
      _
    $region21: #{tpu_custom_call.1} parent=1 // pred_fallthru
      _
    // Predicated region
    $region22: #{tpu_custom_call.1} parent=1 // pred_check
      _
    $region23: #{tpu_custom_call.1} parent=1 // pred_check_branch
      %52 = sbr.rel (0) target = $region25
    $region24: #{tpu_custom_call.1} parent=1 // pred_region
      %53 = dma.done [#allocation3], 128
    $region25: #{tpu_custom_call.1} parent=1 // pred_fallthru
      _
    // Predicated region
    $region26: #{tpu_custom_call.1} parent=1 // pred_check
      _
    $region27: #{tpu_custom_call.1} parent=1 // pred_check_branch
      %55 = sbr.rel (0) target = $region29
    $region28: #{tpu_custom_call.1} parent=1 // pred_region
      %56 = dma.done [#allocation6], 256
    $region29: #{tpu_custom_call.1} parent=1 // pred_fallthru
      _
    // Predicated region
    $region30: #{tpu_custom_call.1} parent=1 // pred_check
      _
    $region31: #{tpu_custom_call.1} parent=1 // pred_check_branch
      %58 = sbr.rel (0) target = $region33
    $region32: #{tpu_custom_call.1} parent=1 // pred_region
      %59 = dma.done [#allocation6], 1024
    $region33: #{tpu_custom_call.1} parent=1 // pred_fallthru
      _
    %v61 = vld [vmem:[#allocation2] sm:$0xff]
    %v62 = vpack.c.bf16 %v61, %v61
    %v63 = vld [vmem:[#allocation5] sm:$0xf]
    %v64 = vld [vmem:[#allocation5 + $0x4] sm:$0xf]
    %v65 = vld [vmem:[#allocation5 + $0x8] sm:$0xf]
    %v66 = vld [vmem:[#allocation5 + $0xc] sm:$0xf]
    %v67 = vld [vmem:[%s2] sm:$0x1]
    %v69 = vlaneseq
    %v70 = vshrl.u32 %v69, 7
    %v71 = vsub.s32 0, %v70
    %v72 = vrot.slane %v67, %v71
    %v78 = vunpack.c.l.b16 %v63
    %v79 = vunpack.c.l.b16 %v64
    %v80 = vunpack.c.l.b16 %v65
    %v81 = vunpack.c.l.b16 %v66
    %v82 = vpack.c.b16 %v79, %v78
    %v83 = vpack.c.b16 %v81, %v80
    %vm86 = vcmask 261120
    %v88 = vsel %vm86, %v62, 0
    %90 = vmatprep.subr.bf16.mxu0 0
    %91 = vmatpush1.bf16.msra.mxu0 %v82
    %92 = vmatprep.subr.bf16.mxu0 0
    %93 = vmatpush1.bf16.msra.mxu0 %v83
    %94 = vmatprep.subr.bf16.mxu0 0
    %95 = vmatpush1.bf16.msra.mxu0 0
    %96 = vmatprep.subr.bf16.mxu0 0
    %97 = vmatpush1.bf16.msra.mxu0 0
    %98 = vmatprep.subr.bf16.mxu0 0
    %99 = vmatpush1.bf16.msra.mxu0 0
    %100 = vmatprep.subr.bf16.mxu0 0
    %101 = vmatpush1.bf16.msra.mxu0 0
    %102 = vmatprep.subr.bf16.mxu0 0
    %103 = vmatpush1.bf16.msra.mxu0 0
    %104 = vmatprep.subr.bf16.mxu0 0
    %105 = vmatpush1.bf16.msra.mxu0 0
    %106 = vmatprep.subr.bf16.mxu0 0
    %107 = vmatpush1.bf16.msra.mxu0 0
    %108 = vmatprep.subr.bf16.mxu0 0
    %109 = vmatpush1.bf16.msra.mxu0 0
    %110 = vmatprep.subr.bf16.mxu0 0
    %111 = vmatpush1.bf16.msra.mxu0 0
    %112 = vmatprep.subr.bf16.mxu0 0
    %113 = vmatpush1.bf16.msra.mxu0 0
    %114 = vmatprep.subr.bf16.mxu0 0
    %115 = vmatpush1.bf16.msra.mxu0 0
    %116 = vmatprep.subr.bf16.mxu0 0
    %117 = vmatpush1.bf16.msra.mxu0 0
    %118 = vmatprep.subr.bf16.mxu0 0
    %119 = vmatpush1.bf16.msra.mxu0 0
    %120 = vmatprep.subr.bf16.mxu0 0
    %121 = vmatpush1.bf16.msra.mxu0 0
    %122 = vmatprep.mubr.bf16.mxu0 0
    %123 = vmatmul.mubr.bf16.gmra.mrb[0].mxu0 %v88
    %v124 = vpop.f32.mrb[0].mxu0
    %v125 = vadd.f32 %v72, %v124
    %v126 = vpop.f32.mrb[0].mxu0
    %v127 = vpop.f32.mrb[0].mxu0
    %v128 = vpop.f32.mrb[0].mxu0
    %129 = vdwg.mxu0
    %v130 = vmax.f32 %v125, 0.0
    %v131 = vpack.c.bf16 %v130, %v130
    %v132 = vld [vmem:[#allocation7] sm:$0xf]
    %v133 = vld [vmem:[#allocation7 + $0x4] sm:$0xf]
    %v134 = vld [vmem:[#allocation7 + $0x8] sm:$0xf]
    %v135 = vld [vmem:[#allocation7 + $0xc] sm:$0xf]
    %v136 = vld [vmem:[#allocation7 + $0x10] sm:$0xf]
    %v137 = vld [vmem:[#allocation7 + $0x14] sm:$0xf]
    %v138 = vld [vmem:[#allocation7 + $0x18] sm:$0xf]
    %v139 = vld [vmem:[#allocation7 + $0x1c] sm:$0xf]
    %v140 = vld [vmem:[#allocation7 + $0x20] sm:$0xf]
    %v141 = vld [vmem:[#allocation7 + $0x24] sm:$0xf]
    %v142 = vld [vmem:[#allocation7 + $0x28] sm:$0xf]
    %v143 = vld [vmem:[#allocation7 + $0x2c] sm:$0xf]
    %v144 = vld [vmem:[#allocation7 + $0x30] sm:$0xf]
    %v145 = vld [vmem:[#allocation7 + $0x34] sm:$0xf]
    %v146 = vld [vmem:[#allocation7 + $0x38] sm:$0xf]
    %v147 = vld [vmem:[#allocation7 + $0x3c] sm:$0xf]
    %v148 = vld [vmem:[%s4] sm:$0x1]
    %v150 = vlaneseq
    %v151 = vshrl.u32 %v150, 7
    %v152 = vsub.s32 0, %v151
    %v153 = vrot.slane %v148, %v152
    %v171 = vunpack.c.l.b16 %v132
    %v172 = vunpack.c.l.b16 %v133
    %v173 = vunpack.c.l.b16 %v134
    %v174 = vunpack.c.l.b16 %v135
    %v175 = vunpack.c.l.b16 %v136
    %v176 = vunpack.c.l.b16 %v137
    %v177 = vunpack.c.l.b16 %v138
    %v178 = vunpack.c.l.b16 %v139
    %v179 = vunpack.c.l.b16 %v140
    %v180 = vunpack.c.l.b16 %v141
    %v181 = vunpack.c.l.b16 %v142
    %v182 = vunpack.c.l.b16 %v143
    %v183 = vunpack.c.l.b16 %v144
    %v184 = vunpack.c.l.b16 %v145
    %v185 = vunpack.c.l.b16 %v146
    %v186 = vunpack.c.l.b16 %v147
    %v187 = vpack.c.b16 %v172, %v171
    %v188 = vpack.c.b16 %v174, %v173
    %v189 = vpack.c.b16 %v176, %v175
    %v190 = vpack.c.b16 %v178, %v177
    %v191 = vpack.c.b16 %v180, %v179
    %v192 = vpack.c.b16 %v182, %v181
    %v193 = vpack.c.b16 %v184, %v183
    %v194 = vpack.c.b16 %v186, %v185
    %203 = vmatprep.subr.bf16.mxu0 0
    %204 = vmatpush1.bf16.msra.mxu0 %v187
    %205 = vmatprep.subr.bf16.mxu0 0
    %206 = vmatpush1.bf16.msra.mxu0 %v188
    %207 = vmatprep.subr.bf16.mxu0 0
    %208 = vmatpush1.bf16.msra.mxu0 %v189
    %209 = vmatprep.subr.bf16.mxu0 0
    %210 = vmatpush1.bf16.msra.mxu0 %v190
    %211 = vmatprep.subr.bf16.mxu0 0
    %212 = vmatpush1.bf16.msra.mxu0 %v191
    %213 = vmatprep.subr.bf16.mxu0 0
    %214 = vmatpush1.bf16.msra.mxu0 %v192
    %215 = vmatprep.subr.bf16.mxu0 0
    %216 = vmatpush1.bf16.msra.mxu0 %v193
    %217 = vmatprep.subr.bf16.mxu0 0
    %218 = vmatpush1.bf16.msra.mxu0 %v194
    %219 = vmatprep.subr.bf16.mxu0 0
    %220 = vmatpush1.bf16.msra.mxu0 0
    %221 = vmatprep.subr.bf16.mxu0 0
    %222 = vmatpush1.bf16.msra.mxu0 0
    %223 = vmatprep.subr.bf16.mxu0 0
    %224 = vmatpush1.bf16.msra.mxu0 0
    %225 = vmatprep.subr.bf16.mxu0 0
    %226 = vmatpush1.bf16.msra.mxu0 0
    %227 = vmatprep.subr.bf16.mxu0 0
    %228 = vmatpush1.bf16.msra.mxu0 0
    %229 = vmatprep.subr.bf16.mxu0 0
    %230 = vmatpush1.bf16.msra.mxu0 0
    %231 = vmatprep.subr.bf16.mxu0 0
    %232 = vmatpush1.bf16.msra.mxu0 0
    %233 = vmatprep.subr.bf16.mxu0 0
    %234 = vmatpush1.bf16.msra.mxu0 0
    %235 = vmatprep.mubr.bf16.mxu0 0
    %236 = vmatmul.mubr.bf16.gmra.mrb[0].mxu0 %v131
    %v237 = vpop.f32.mrb[0].mxu0
    %v238 = vadd.f32 %v153, %v237
    %v239 = vpop.f32.mrb[0].mxu0
    %v240 = vpop.f32.mrb[0].mxu0
    %v241 = vpop.f32.mrb[0].mxu0
    %242 = vdwg.mxu0
    %v243 = vxor.u32 %v238, 2147483648
    %v244 = vmul.f32 %v243, 1.442695
    %v245 = vpow.pop %v244
    %v246 = vadd.f32 %v245, 1.0
    %v247 = vrcp.pop %v246
    %v248 = vmul.f32 1.0, %v247
    %249 = vst [vmem:[#allocation8] sm:$0xff] %v248
    // Predicated region
    $region34: #{tpu_custom_call.1} parent=1 // pred_check
      _
    $region35: #{tpu_custom_call.1} parent=1 // pred_check_branch
      %251 = sbr.rel (0) target = $region37
    $region36: #{tpu_custom_call.1} parent=1 // pred_region
      %s253 = ssub.s32 128, 128
      %254 = vsyncadd [#allocation4], %s253
      %s256 = sshll.u32 [#allocation8], 4
      %s257 = int_to_ptr.vmem [resolvable:$true] %s256
      %259 = dma.vmem_to_hbm [thread:$0]  %s257, 128, %s5, [#allocation4]
    $region37: #{tpu_custom_call.1} parent=1 // pred_fallthru
      _
    // Predicated region
    $region38: #{tpu_custom_call.1} parent=1 // pred_check
      _
    $region39: #{tpu_custom_call.1} parent=1 // pred_check_branch
      %261 = sbr.rel (0) target = $region41
    $region40: #{tpu_custom_call.1} parent=1 // pred_region
      %262 = dma.done [#allocation4], 128
    $region41: #{tpu_custom_call.1} parent=1 // pred_fallthru
      _
    %263 = vsyncpa [#allocation3], 1
    %264 = vsyncpa [#allocation6], 1
    %265 = vsyncpa [#allocation4], 1

// kernel: tpu_custom_call.1
$region0: #{tpu_custom_call.1}
  #allocation0 [shape = 'u32[]', space=smem, size = 0x4, offset = 0x4, fixed_abs, tag = 'smem constant byte address 0x4 - core index']
  #allocation1 [shape = 'u32[144,128]{1,0:T(1,128)}', space=vmem, size = 0x12000, scoped, tag = 'internal scratch']
  %s0 = inlined_call_operand.hbm [shape: f32[8,32], index: 0, kind: input, shape index: {}]
  %s1 = inlined_call_operand.hbm [shape: bf16[32,128], index: 1, kind: input, shape index: {}]
  %s2 = inlined_call_operand.vmem [shape: f32[1,128], index: 2, kind: input, shape index: {}]
  %s3 = inlined_call_operand.hbm [shape: bf16[128,128], index: 3, kind: input, shape index: {}]
  %s4 = inlined_call_operand.vmem [shape: f32[1,128], index: 4, kind: input, shape index: {}]
  %s5 = inlined_call_operand.hbm [shape: f32[8,128], index: 5, kind: output, shape index: {}]
  %s6 = sld [smem:[#allocation0]]
  $region42: #{tpu_custom_call.1} parent=0
    _
  %s8 = ssub.s32 1, %s6
  %s9 = scalar_select 0, %s8, %s6
  $region1: #{tpu_custom_call.1} parent=0
    #allocation2 [shape = 'u8[4096]{0}', space=vmem, size = 0x1000, scoped, tag = 'input window, operand 0, single buffered']
    #allocation3 [shape = 's32[1]{0}', space=sflag, size = 0x4, scoped, tag = 'scoped memory for tpu_custom_call.1']
    #allocation4 [shape = 's32[1]{0}', space=sflag, size = 0x4, scoped, tag = 'scoped memory for tpu_custom_call.1']
    #allocation5 [shape = 'u8[8192]{0}', space=vmem, size = 0x2000, scoped, tag = 'input window, operand 1, single buffered']
    #allocation6 [shape = 's32[1]{0}', space=sflag, size = 0x4, scoped, tag = 'scoped memory for tpu_custom_call.1']
    #allocation7 [shape = 'u8[32768]{0}', space=vmem, size = 0x8000, scoped, tag = 'input window, operand 3, single buffered']
    #allocation8 [shape = 'u8[4096]{0}', space=vmem, size = 0x1000, scoped, tag = 'output window, operand 0, single buffered']
    %10 = vsyncpa [#allocation3], 0
    %11 = vsyncpa [#allocation6], 0
    %12 = vsyncpa [#allocation4], 0
    // Predicated region
    $region2: #{tpu_custom_call.1} parent=1 // pred_check
      _
    $region3: #{tpu_custom_call.1} parent=1 // pred_check_branch
      %14 = sbr.rel (0) target = $region5
    $region4: #{tpu_custom_call.1} parent=1 // pred_region
      %s16 = ssub.s32 128, 128
      %17 = vsyncadd [#allocation3], %s16
      %s19 = sshll.u32 [#allocation2], 4
      %s20 = int_to_ptr.vmem [resolvable:$true] %s19
      %22 = dma.hbm_to_vmem [thread:$0]  %s0, 128, %s20, [#allocation3]
    $region5: #{tpu_custom_call.1} parent=1 // pred_fallthru
      _
    // Predicated region
    $region6: #{tpu_custom_call.1} parent=1 // pred_check
      _
    $region7: #{tpu_custom_call.1} parent=1 // pred_check_branch
      %24 = sbr.rel (0) target = $region9
    $region8: #{tpu_custom_call.1} parent=1 // pred_region
      %s26 = ssub.s32 256, 256
      %27 = vsyncadd [#allocation6], %s26
      %s28 = sshll.u32 [#allocation5], 4
      %s29 = int_to_ptr.vmem [resolvable:$true] %s28
      %34 = dma.hbm_to_vmem [thread:$0]  %s1, 256, %s29, [#allocation6], 64, 64, 4
    $region9: #{tpu_custom_call.1} parent=1 // pred_fallthru
      _
    // Predicated region
    $region10: #{tpu_custom_call.1} parent=1 // pred_check
      _
    $region11: #{tpu_custom_call.1} parent=1 // pred_check_branch
      %36 = sbr.rel (0) target = $region13
    $region12: #{tpu_custom_call.1} parent=1 // pred_region
      _
    $region13: #{tpu_custom_call.1} parent=1 // pred_fallthru
      _
    // Predicated region
    $region14: #{tpu_custom_call.1} parent=1 // pred_check
      _
    $region15: #{tpu_custom_call.1} parent=1 // pred_check_branch
      %38 = sbr.rel (0) target = $region17
    $region16: #{tpu_custom_call.1} parent=1 // pred_region
      %s40 = ssub.s32 1024, 1024
      %41 = vsyncadd [#allocation6], %s40
      %s42 = sshll.u32 [#allocation7], 4
      %s43 = int_to_ptr.vmem [resolvable:$true] %s42
      %48 = dma.hbm_to_vmem [thread:$0]  %s3, 1024, %s43, [#allocation6], 64, 64, 4
    $region17: #{tpu_custom_call.1} parent=1 // pred_fallthru
      _
    // Predicated region
    $region18: #{tpu_custom_call.1} parent=1 // pred_check
      _
    $region19: #{tpu_custom_call.1} parent=1 // pred_check_branch
      %50 = sbr.rel (0) target = $region21
    $region20: #{tpu_custom_call.1} parent=1 // pred_region
      _
    $region21: #{tpu_custom_call.1} parent=1 // pred_fallthru
      _
    // Predicated region
    $region22: #{tpu_custom_call.1} parent=1 // pred_check
      _
    $region23: #{tpu_custom_call.1} parent=1 // pred_check_branch
      %52 = sbr.rel (0) target = $region25
    $region24: #{tpu_custom_call.1} parent=1 // pred_region
      %53 = dma.done [#allocation3], 128
    $region25: #{tpu_custom_call.1} parent=1 // pred_fallthru
      _
    // Predicated region
    $region26: #{tpu_custom_call.1} parent=1 // pred_check
      _
    $region27: #{tpu_custom_call.1} parent=1 // pred_check_branch
      %55 = sbr.rel (0) target = $region29
    $region28: #{tpu_custom_call.1} parent=1 // pred_region
      %56 = dma.done [#allocation6], 256
    $region29: #{tpu_custom_call.1} parent=1 // pred_fallthru
      _
    // Predicated region
    $region30: #{tpu_custom_call.1} parent=1 // pred_check
      _
    $region31: #{tpu_custom_call.1} parent=1 // pred_check_branch
      %58 = sbr.rel (0) target = $region33
    $region32: #{tpu_custom_call.1} parent=1 // pred_region
      %59 = dma.done [#allocation6], 1024
    $region33: #{tpu_custom_call.1} parent=1 // pred_fallthru
      _
    %v61 = vld [vmem:[#allocation2] sm:$0xff]
    %v62 = vpack.c.bf16 %v61, %v61
    %v63 = vld [vmem:[#allocation5] sm:$0xf]
    %v64 = vld [vmem:[#allocation5 + $0x4] sm:$0xf]
    %v65 = vld [vmem:[#allocation5 + $0x8] sm:$0xf]
    %v66 = vld [vmem:[#allocation5 + $0xc] sm:$0xf]
    %v67 = vld [vmem:[%s2] sm:$0x1]
    %v69 = vlaneseq
    %v70 = vshrl.u32 %v69, 7
    %v71 = vsub.s32 0, %v70
    %v72 = vrot.slane %v67, %v71
    %v78 = vunpack.c.l.b16 %v63
    %v79 = vunpack.c.l.b16 %v64
    %v80 = vunpack.c.l.b16 %v65
    %v81 = vunpack.c.l.b16 %v66
    %v82 = vpack.c.b16 %v79, %v78
    %v83 = vpack.c.b16 %v81, %v80
    %vm86 = vcmask 261120
    %v88 = vsel %vm86, %v62, 0
    %90 = vmatprep.subr.bf16.mxu0 0
    %91 = vmatpush1.bf16.msra.mxu0 %v82
    %92 = vmatprep.subr.bf16.mxu0 0
    %93 = vmatpush1.bf16.msra.mxu0 %v83
    %94 = vmatprep.subr.bf16.mxu0 0
    %95 = vmatpush1.bf16.msra.mxu0 0
    %96 = vmatprep.subr.bf16.mxu0 0
    %97 = vmatpush1.bf16.msra.mxu0 0
    %98 = vmatprep.subr.bf16.mxu0 0
    %99 = vmatpush1.bf16.msra.mxu0 0
    %100 = vmatprep.subr.bf16.mxu0 0
    %101 = vmatpush1.bf16.msra.mxu0 0
    %102 = vmatprep.subr.bf16.mxu0 0
    %103 = vmatpush1.bf16.msra.mxu0 0
    %104 = vmatprep.subr.bf16.mxu0 0
    %105 = vmatpush1.bf16.msra.mxu0 0
    %106 = vmatprep.subr.bf16.mxu0 0
    %107 = vmatpush1.bf16.msra.mxu0 0
    %108 = vmatprep.subr.bf16.mxu0 0
    %109 = vmatpush1.bf16.msra.mxu0 0
    %110 = vmatprep.subr.bf16.mxu0 0
    %111 = vmatpush1.bf16.msra.mxu0 0
    %112 = vmatprep.subr.bf16.mxu0 0
    %113 = vmatpush1.bf16.msra.mxu0 0
    %114 = vmatprep.subr.bf16.mxu0 0
    %115 = vmatpush1.bf16.msra.mxu0 0
    %116 = vmatprep.subr.bf16.mxu0 0
    %117 = vmatpush1.bf16.msra.mxu0 0
    %118 = vmatprep.subr.bf16.mxu0 0
    %119 = vmatpush1.bf16.msra.mxu0 0
    %120 = vmatprep.subr.bf16.mxu0 0
    %121 = vmatpush1.bf16.msra.mxu0 0
    %122 = vmatprep.mubr.bf16.mxu0 0
    %123 = vmatmul.mubr.bf16.gmra.mrb[0].mxu0 %v88
    %v124 = vpop.f32.mrb[0].mxu0
    %v125 = vadd.f32 %v72, %v124
    %v126 = vpop.f32.mrb[0].mxu0
    %v127 = vpop.f32.mrb[0].mxu0
    %v128 = vpop.f32.mrb[0].mxu0
    %129 = vdwg.mxu0
    %v130 = vmax.f32 %v125, 0.0
    %v131 = vpack.c.bf16 %v130, %v130
    %v132 = vld [vmem:[#allocation7] sm:$0xf]
    %v133 = vld [vmem:[#allocation7 + $0x4] sm:$0xf]
    %v134 = vld [vmem:[#allocation7 + $0x8] sm:$0xf]
    %v135 = vld [vmem:[#allocation7 + $0xc] sm:$0xf]
    %v136 = vld [vmem:[#allocation7 + $0x10] sm:$0xf]
    %v137 = vld [vmem:[#allocation7 + $0x14] sm:$0xf]
    %v138 = vld [vmem:[#allocation7 + $0x18] sm:$0xf]
    %v139 = vld [vmem:[#allocation7 + $0x1c] sm:$0xf]
    %v140 = vld [vmem:[#allocation7 + $0x20] sm:$0xf]
    %v141 = vld [vmem:[#allocation7 + $0x24] sm:$0xf]
    %v142 = vld [vmem:[#allocation7 + $0x28] sm:$0xf]
    %v143 = vld [vmem:[#allocation7 + $0x2c] sm:$0xf]
    %v144 = vld [vmem:[#allocation7 + $0x30] sm:$0xf]
    %v145 = vld [vmem:[#allocation7 + $0x34] sm:$0xf]
    %v146 = vld [vmem:[#allocation7 + $0x38] sm:$0xf]
    %v147 = vld [vmem:[#allocation7 + $0x3c] sm:$0xf]
    %v148 = vld [vmem:[%s4] sm:$0x1]
    %v150 = vlaneseq
    %v151 = vshrl.u32 %v150, 7
    %v152 = vsub.s32 0, %v151
    %v153 = vrot.slane %v148, %v152
    %v171 = vunpack.c.l.b16 %v132
    %v172 = vunpack.c.l.b16 %v133
    %v173 = vunpack.c.l.b16 %v134
    %v174 = vunpack.c.l.b16 %v135
    %v175 = vunpack.c.l.b16 %v136
    %v176 = vunpack.c.l.b16 %v137
    %v177 = vunpack.c.l.b16 %v138
    %v178 = vunpack.c.l.b16 %v139
    %v179 = vunpack.c.l.b16 %v140
    %v180 = vunpack.c.l.b16 %v141
    %v181 = vunpack.c.l.b16 %v142
    %v182 = vunpack.c.l.b16 %v143
    %v183 = vunpack.c.l.b16 %v144
    %v184 = vunpack.c.l.b16 %v145
    %v185 = vunpack.c.l.b16 %v146
    %v186 = vunpack.c.l.b16 %v147
    %v187 = vpack.c.b16 %v172, %v171
    %v188 = vpack.c.b16 %v174, %v173
    %v189 = vpack.c.b16 %v176, %v175
    %v190 = vpack.c.b16 %v178, %v177
    %v191 = vpack.c.b16 %v180, %v179
    %v192 = vpack.c.b16 %v182, %v181
    %v193 = vpack.c.b16 %v184, %v183
    %v194 = vpack.c.b16 %v186, %v185
    %203 = vmatprep.subr.bf16.mxu0 0
    %204 = vmatpush1.bf16.msra.mxu0 %v187
    %205 = vmatprep.subr.bf16.mxu0 0
    %206 = vmatpush1.bf16.msra.mxu0 %v188
    %207 = vmatprep.subr.bf16.mxu0 0
    %208 = vmatpush1.bf16.msra.mxu0 %v189
    %209 = vmatprep.subr.bf16.mxu0 0
    %210 = vmatpush1.bf16.msra.mxu0 %v190
    %211 = vmatprep.subr.bf16.mxu0 0
    %212 = vmatpush1.bf16.msra.mxu0 %v191
    %213 = vmatprep.subr.bf16.mxu0 0
    %214 = vmatpush1.bf16.msra.mxu0 %v192
    %215 = vmatprep.subr.bf16.mxu0 0
    %216 = vmatpush1.bf16.msra.mxu0 %v193
    %217 = vmatprep.subr.bf16.mxu0 0
    %218 = vmatpush1.bf16.msra.mxu0 %v194
    %219 = vmatprep.subr.bf16.mxu0 0
    %220 = vmatpush1.bf16.msra.mxu0 0
    %221 = vmatprep.subr.bf16.mxu0 0
    %222 = vmatpush1.bf16.msra.mxu0 0
    %223 = vmatprep.subr.bf16.mxu0 0
    %224 = vmatpush1.bf16.msra.mxu0 0
    %225 = vmatprep.subr.bf16.mxu0 0
    %226 = vmatpush1.bf16.msra.mxu0 0
    %227 = vmatprep.subr.bf16.mxu0 0
    %228 = vmatpush1.bf16.msra.mxu0 0
    %229 = vmatprep.subr.bf16.mxu0 0
    %230 = vmatpush1.bf16.msra.mxu0 0
    %231 = vmatprep.subr.bf16.mxu0 0
    %232 = vmatpush1.bf16.msra.mxu0 0
    %233 = vmatprep.subr.bf16.mxu0 0
    %234 = vmatpush1.bf16.msra.mxu0 0
    %235 = vmatprep.mubr.bf16.mxu0 0
    %236 = vmatmul.mubr.bf16.gmra.mrb[0].mxu0 %v131
    %v237 = vpop.f32.mrb[0].mxu0
    %v238 = vadd.f32 %v153, %v237
    %v239 = vpop.f32.mrb[0].mxu0
    %v240 = vpop.f32.mrb[0].mxu0
    %v241 = vpop.f32.mrb[0].mxu0
    %242 = vdwg.mxu0
    %v243 = vxor.u32 %v238, 2147483648
    %v244 = vmul.f32 %v243, 1.442695
    %v245 = vpow.pop %v244
    %v246 = vadd.f32 %v245, 1.0
    %v247 = vrcp.pop %v246
    %v248 = vmul.f32 1.0, %v247
    %249 = vst [vmem:[#allocation8] sm:$0xff] %v248
    // Predicated region
    $region34: #{tpu_custom_call.1} parent=1 // pred_check
      _
    $region35: #{tpu_custom_call.1} parent=1 // pred_check_branch
      %251 = sbr.rel (0) target = $region37
    $region36: #{tpu_custom_call.1} parent=1 // pred_region
      %s253 = ssub.s32 128, 128
      %254 = vsyncadd [#allocation4], %s253
      %s256 = sshll.u32 [#allocation8], 4
      %s257 = int_to_ptr.vmem [resolvable:$true] %s256
      %259 = dma.vmem_to_hbm [thread:$0]  %s257, 128, %s5, [#allocation4]
    $region37: #{tpu_custom_call.1} parent=1 // pred_fallthru
      _
    // Predicated region
    $region38: #{tpu_custom_call.1} parent=1 // pred_check
      _
    $region39: #{tpu_custom_call.1} parent=1 // pred_check_branch
      %261 = sbr.rel (0) target = $region41
    $region40: #{tpu_custom_call.1} parent=1 // pred_region
      %262 = dma.done [#allocation4], 128
    $region41: #{tpu_custom_call.1} parent=1 // pred_fallthru
      _
    %263 = vsyncpa [#allocation3], 1
    %264 = vsyncpa [#allocation6], 1
    %265 = vsyncpa [#allocation4], 1

</llo_original>
